<compile_context>
chip_gen: v6e
topology: v6e:2x2x1
jax: 0.10.0
libtpu: 0.0.40
codegen_flags: <defaults>
</compile_context>

<pallas_src>
import functools

import jax
import jax.numpy as jnp
import numpy as np
from jax.experimental import pallas as pl
from jax.experimental.pallas import tpu as pltpu


def _round_up(x, m):
    return (x + m - 1) // m * m


def length_regulator_kernel(win_ref, x_ref, srel_ref, dwin_ref, out_ref, *,
                            tile_ml, k_win):
    # win_ref:  (B, grid_m) int32 SMEM (scalar prefetch) - phoneme window start
    # x_ref:    (1, T_pad, H)     VMEM - batch-resident phoneme vectors
    # srel_ref: (1, 1, k_win) i32 VMEM - windowed starts, pre-shifted by -m*tile_ml
    # dwin_ref: (1, 1, k_win) i32 VMEM - windowed clamped durations
    # out_ref:  (1, tile_ml, H)   VMEM
    b = pl.program_id(0)
    m = pl.program_id(1)

    # Windowed slab of phoneme vectors: dynamic, 8-aligned sublane slice of the
    # batch-resident x block.
    w = pl.multiple_of(win_ref[b, m], 8)
    x_win = x_ref[0, pl.ds(w, k_win), :]                       # (k_win, H)

    srel = srel_ref[0]                                         # (1, k_win) int32
    dwin = dwin_ref[0]                                         # (1, k_win) int32

    # align[r, i] = 1 iff 0 <= r - srel[i] < dwin[i].  Single unsigned compare:
    # negative differences wrap to huge uint32 values and fail the compare.
    j = jax.lax.broadcasted_iota(jnp.int32, (tile_ml, k_win), 0)
    u = j - srel                                               # (tile_ml, k_win)
    align = (pltpu.bitcast(u, jnp.uint32) <
             pltpu.bitcast(dwin, jnp.uint32)).astype(x_win.dtype)

    # Exact row-copy expansion (each output row matched by exactly one column).
    out = jnp.dot(align, x_win, preferred_element_type=jnp.float32)
    out_ref[0] = out.astype(out_ref.dtype)


def length_regulator(x, duration, max_len, tile_ml=None):
    """x: [B, T, H] float, duration: [B, T] int, max_len: static int.

    Returns (output [B, max_len, H], mel_len [B] int32)."""
    B, T, H = x.shape

    # ---- tiling choices -----------------------------------------------------
    if tile_ml is None:
        # 128 floor (lane-dense stores / MXU fill), 512 cap (v7x 64 MiB VMEM
        # headroom; large enough to amortize per-step overhead on v5e/v6e).
        tile_ml = min(512, max(128, _round_up(max_len, 8)))
    tile_ml = _round_up(min(tile_ml, _round_up(max_len, 8)), 8)
    grid_m = pl.cdiv(max_len, tile_ml)

    # ---- host-side prep: clamp, compaction, cumsum, window offsets ----------
    d = jnp.maximum(duration.astype(jnp.int32), 0)             # (B, T)
    mel_len = jnp.sum(d, axis=1, dtype=jnp.int32)              # (B,)

    # A tile of tile_ml frames sources at most tile_ml + 1 nonzero-duration
    # phonemes, so k_win = tile_ml + 8 (8-aligned start) suffices once
    # zero-duration phonemes are compacted to the tail.
    k_cap = _round_up(tile_ml + 8, 8)
    windowed = k_cap < T
    if windowed:
        T_pad = _round_up(T, 8)
        if T_pad != T:
            d = jnp.pad(d, ((0, 0), (0, T_pad - T)))
            x = jnp.pad(x, ((0, 0), (0, T_pad - T), (0, 0)))
        # Stable compaction: zero-duration phonemes (contribute nothing) to the
        # tail, keeping the relative order of the contributing ones.
        order = jnp.argsort((d == 0).astype(jnp.int32), axis=1, stable=True)
        d = jnp.take_along_axis(d, order, axis=1)
        x = jnp.take_along_axis(x, order[:, :, None], axis=1)
        k_win = k_cap
    else:
        T_pad = T
        k_win = T

    ends = jnp.cumsum(d, axis=1, dtype=jnp.int32)              # inclusive cumsum
    starts = ends - d                                          # exclusive cumsum

    # Window offset per (b, m): first phoneme whose frames reach the tile,
    # rounded down to a sublane (8) boundary and clamped in-bounds.
    tile0 = jnp.arange(grid_m, dtype=jnp.int32) * tile_ml      # (grid_m,)
    i0 = jnp.sum(ends[:, None, :] <= tile0[None, :, None], axis=-1)
    win = jnp.clip((i0 // 8) * 8, 0, T_pad - k_win).astype(jnp.int32)

    # Windowed per-tile starts (pre-shifted by the tile origin) and durations.
    pos = win[:, :, None] + jnp.arange(k_win, dtype=jnp.int32)[None, None, :]
    srel = (jnp.take_along_axis(starts[:, None, :], pos, axis=2)
            - tile0[None, :, None]).astype(jnp.int32)          # (B, grid_m, k_win)
    dwin = jnp.take_along_axis(d[:, None, :], pos, axis=2).astype(jnp.int32)

    # ---- pallas_call ---------------------------------------------------------
    itemsize = x.dtype.itemsize
    vmem_bytes = (
        2 * T_pad * H * itemsize          # x block (double-buffered)
        + 2 * tile_ml * H * itemsize      # out block (double-buffered)
        + 2 * 2 * k_win * 4               # srel + dwin blocks
        + 8 * tile_ml * k_win * 4         # mask / iota / matmul intermediates
    )
    vmem_limit = int(min(64 * 2 ** 20, max(16 * 2 ** 20, 2 * vmem_bytes)))

    cost = pl.CostEstimate(
        flops=int(2 * B * grid_m * tile_ml * k_win * H),
        transcendentals=0,
        bytes_accessed=int((B * T_pad * H + B * max_len * H) * itemsize
                           + 2 * B * grid_m * k_win * 4),
    )

    kernel = functools.partial(length_regulator_kernel,
                               tile_ml=tile_ml, k_win=k_win)
    out = pl.pallas_call(
        kernel,
        out_shape=jax.ShapeDtypeStruct((B, max_len, H), x.dtype),
        grid_spec=pltpu.PrefetchScalarGridSpec(
            num_scalar_prefetch=1,
            grid=(B, grid_m),
            in_specs=[
                # x block index only changes with b -> DMA'd once per batch.
                pl.BlockSpec((1, T_pad, H), lambda b, m, win: (b, 0, 0)),
                pl.BlockSpec((1, 1, k_win), lambda b, m, win: (b, m, 0)),
                pl.BlockSpec((1, 1, k_win), lambda b, m, win: (b, m, 0)),
            ],
            out_specs=pl.BlockSpec((1, tile_ml, H),
                                   lambda b, m, win: (b, m, 0)),
        ),
        compiler_params=pltpu.CompilerParams(
            # Each (b, m) writes a distinct output block -> both axes can shard
            # across TensorCores (v7x megacore); batch kept outermost so the
            # x block is revisited (one fetch per batch) across max_len tiles.
            dimension_semantics=("parallel", "parallel"),
            vmem_limit_bytes=vmem_limit,
        ),
        cost_estimate=cost,
    )(win, x, srel, dwin)

    return out, mel_len


def _reference(xn, dn, max_len):
    """Pure-numpy port of the PyTorch LengthRegulator forward (expand+pad)."""
    B, T, H = xn.shape
    out = np.zeros((B, max_len, H), dtype=xn.dtype)
    mel_len = np.zeros((B,), dtype=np.int64)
    for b in range(B):
        rows = []
        for i in range(T):
            rows.extend([xn[b, i]] * max(int(dn[b, i]), 0))
        mel_len[b] = len(rows)
        L = min(len(rows), max_len)
        if L:
            out[b, :L] = np.stack(rows[:L])
    return out, mel_len


if __name__ == "__main__":
    key = jax.random.PRNGKey(0)
    k1, k2, k3, k4 = jax.random.split(key, 4)

    # Case 1: tiny shapes (phoneme windowing not engaged).
    B, T, H, max_len = 2, 8, 32, 24
    x = jax.random.normal(k1, (B, T, H), dtype=jnp.float32)
    dur = jax.random.randint(k2, (B, T), 0, 4, dtype=jnp.int32)
    out, mel_len = length_regulator(x, dur, max_len)
    jax.block_until_ready((out, mel_len))
    ref_out, ref_len = _reference(np.asarray(x), np.asarray(dur), max_len)
    assert np.allclose(np.asarray(out), ref_out, atol=1e-5), "case1 output mismatch"
    assert np.array_equal(np.asarray(mel_len), ref_len), "case1 mel_len mismatch"

    # Case 2: longer phoneme axis -> exercises the scalar-prefetched K-window,
    # zero-duration compaction, and the clipped partial final max_len tile.
    B, T, H, max_len = 2, 160, 32, 200
    x = jax.random.normal(k3, (B, T, H), dtype=jnp.float32)
    dur = jax.random.randint(k4, (B, T), 0, 4, dtype=jnp.int32)
    out, mel_len = length_regulator(x, dur, max_len, tile_ml=128)
    jax.block_until_ready((out, mel_len))
    ref_out, ref_len = _reference(np.asarray(x), np.asarray(dur), max_len)
    assert np.allclose(np.asarray(out), ref_out, atol=1e-5), "case2 output mismatch"
    assert np.array_equal(np.asarray(mel_len), ref_len), "case2 mel_len mismatch"

    print("KERNEL_OK")
</pallas_src>

<mosaic_0001>
module attributes {stable_mosaic.version = 11 : i64} {
  func.func @length_regulator_kernel(%arg0: i32, %arg1: i32, %arg2: memref<2x1xi32, #tpu.memory_space<smem>>, %arg3: memref<1x8x32xf32, #tpu.memory_space<vmem>>, %arg4: memref<1x1x8xi32, #tpu.memory_space<vmem>>, %arg5: memref<1x1x8xi32, #tpu.memory_space<vmem>>, %arg6: memref<1x24x32xf32, #tpu.memory_space<vmem>>) attributes {dimension_semantics = [#tpu.dimension_semantics<parallel>, #tpu.dimension_semantics<parallel>], iteration_bounds = array<i64: 2, 1>, scalar_prefetch = 1 : i64, scratch_operands = 0 : i64, tpu.core_type = #tpu.core_type<tc>, window_params = [{transform_indices = @transform_0, window_bounds = array<i64: 1, 8, 32>}, {transform_indices = @transform_1, window_bounds = array<i64: 1, 1, 8>}, {transform_indices = @transform_2, window_bounds = array<i64: 1, 1, 8>}, {transform_indices = @transform_3, window_bounds = array<i64: 1, 24, 32>}]} {
    %0 = arith.index_cast %arg0 : i32 to index
    %1 = arith.index_cast %arg1 : i32 to index
    %2 = memref.load %arg2[%0, %1] : memref<2x1xi32, #tpu.memory_space<smem>>
    %3 = tpu.assume_multiple %2, 8 : i32
    %c0 = arith.constant 0 : index
    %4 = arith.index_cast %3 : i32 to index
    %c0_0 = arith.constant 0 : index
    %5 = vector.load %arg3[%c0, %4, %c0_0] : memref<1x8x32xf32, #tpu.memory_space<vmem>>, vector<1x8x32xf32>
    %6 = vector.shape_cast %5 : vector<1x8x32xf32> to vector<8x32xf32>
    %c0_1 = arith.constant 0 : index
    %c0_2 = arith.constant 0 : index
    %c0_3 = arith.constant 0 : index
    %7 = vector.load %arg4[%c0_1, %c0_2, %c0_3] : memref<1x1x8xi32, #tpu.memory_space<vmem>>, vector<1x1x8xi32>
    %8 = vector.shape_cast %7 : vector<1x1x8xi32> to vector<1x8xi32>
    %c0_4 = arith.constant 0 : index
    %c0_5 = arith.constant 0 : index
    %c0_6 = arith.constant 0 : index
    %9 = vector.load %arg5[%c0_4, %c0_5, %c0_6] : memref<1x1x8xi32, #tpu.memory_space<vmem>>, vector<1x1x8xi32>
    %10 = vector.shape_cast %9 : vector<1x1x8xi32> to vector<1x8xi32>
    %11 = tpu.iota {dimensions = array<i32: 0>} : vector<24x8xi32>
    %12 = vector.broadcast %8 : vector<1x8xi32> to vector<24x8xi32>
    %13 = arith.subi %11, %12 : vector<24x8xi32>
    %14 = tpu.bitcast %13 : vector<24x8xi32> -> vector<24x8xi32>
    %15 = tpu.bitcast %10 : vector<1x8xi32> -> vector<1x8xi32>
    %16 = vector.broadcast %15 : vector<1x8xi32> to vector<24x8xi32>
    %17 = arith.cmpi ult, %14, %16 : vector<24x8xi32>
    %18 = arith.extui %17 : vector<24x8xi1> to vector<24x8xi32>
    %19 = arith.sitofp %18 : vector<24x8xi32> to vector<24x8xf32>
    %cst = arith.constant dense<0.000000e+00> : vector<24x32xf32>
    %20 = tpu.matmul %19, %6, %cst {dimension_numbers = #tpu.dot_dimension_numbers<[1], [0], [0], [1], [0, 0, 1, 1], [], []>} : vector<24x8xf32>, vector<8x32xf32>, vector<24x32xf32> -> vector<24x32xf32>
    %c0_7 = arith.constant 0 : index
    %c0_8 = arith.constant 0 : index
    %c0_9 = arith.constant 0 : index
    %21 = vector.load %arg6[%c0_7, %c0_8, %c0_9] : memref<1x24x32xf32, #tpu.memory_space<vmem>>, vector<1x24x32xf32>
    %22 = vector.shape_cast %21 : vector<1x24x32xf32> to vector<24x32xf32>
    %23 = vector.shape_cast %20 : vector<24x32xf32> to vector<1x24x32xf32>
    tpu.vector_store %arg6[%c0_7, %c0_8, %c0_9], %23 {strides = array<i32>} : memref<1x24x32xf32, #tpu.memory_space<vmem>>, vector<1x24x32xf32>,
    return
  }
  func.func @transform_0(%arg0: i32, %arg1: i32, %arg2: memref<2x1xi32, #tpu.memory_space<smem>>) -> (i32, i32, i32) {
    %c0_i32 = arith.constant 0 : i32
    %c0_i32_0 = arith.constant 0 : i32
    %c0_i32_1 = arith.constant 0 : i32
    return %arg0, %c0_i32, %c0_i32_0 : i32, i32, i32
  }
  func.func @transform_1(%arg0: i32, %arg1: i32, %arg2: memref<2x1xi32, #tpu.memory_space<smem>>) -> (i32, i32, i32) {
    %c0_i32 = arith.constant 0 : i32
    %c0_i32_0 = arith.constant 0 : i32
    return %arg0, %arg1, %c0_i32 : i32, i32, i32
  }
  func.func @transform_2(%arg0: i32, %arg1: i32, %arg2: memref<2x1xi32, #tpu.memory_space<smem>>) -> (i32, i32, i32) {
    %c0_i32 = arith.constant 0 : i32
    %c0_i32_0 = arith.constant 0 : i32
    return %arg0, %arg1, %c0_i32 : i32, i32, i32
  }
  func.func @transform_3(%arg0: i32, %arg1: i32, %arg2: memref<2x1xi32, #tpu.memory_space<smem>>) -> (i32, i32, i32) {
    %c0_i32 = arith.constant 0 : i32
    %c0_i32_0 = arith.constant 0 : i32
    return %arg0, %arg1, %c0_i32 : i32, i32, i32
  }
}

</mosaic_0001>

<llo_original>
// kernel: tpu_custom_call.1
$region0: #{tpu_custom_call.1}
  #allocation0 [shape = 'u32[]', space=smem, size = 0x4, offset = 0x4, fixed_abs, tag = 'smem constant byte address 0x4 - core index']
  #allocation1 [shape = 'u32[144,128]{1,0:T(1,128)}', space=vmem, size = 0x12000, scoped, tag = 'internal scratch']
  #allocation2 [shape = 's32[1]{0}', space=sflag, size = 0x4, scoped, tag = 'scoped memory for tpu_custom_call.1']
  #allocation3 [shape = 'u8[1024]{0}', space=smem, size = 0x400, scoped, tag = 'prefetched SMEM operand 0']
  %s0 = inlined_call_operand.vmem [shape: s32[2,1], index: 0, kind: input, shape index: {}]
  %s1 = inlined_call_operand.hbm [shape: f32[2,8,32], index: 1, kind: input, shape index: {}]
  %s2 = inlined_call_operand.vmem [shape: s32[2,1,8], index: 2, kind: input, shape index: {}]
  %s3 = inlined_call_operand.vmem [shape: s32[2,1,8], index: 3, kind: input, shape index: {}]
  %s4 = inlined_call_operand.hbm [shape: f32[2,24,32], index: 4, kind: output, shape index: {}]
  %s5 = sld [smem:[#allocation0]]
  $region49: #{tpu_custom_call.1} parent=0
    _
  %s7 = ssub.s32 1, %s5
  %s8 = scalar_select 0, %s7, %s5
  %s9 = sshll.u32 %s0, 4
  %s10 = int_to_ptr.vmem [resolvable:$true] %s9
  %12 = dma.vmem_to_smem %s10, 32, [#allocation3], [#allocation2]
  %13 = dma.done [#allocation2], 32
  %14 = sfence
  $region1: #{tpu_custom_call.1} parent=0
    #allocation4 [shape = 'u8[8192]{0}', space=vmem, size = 0x2000, scoped, tag = 'input window, operand 1']
    #allocation5 [shape = 's32[2]{0}', space=sflag, size = 0x8, scoped, tag = 'scoped memory for tpu_custom_call.1']
    #allocation6 [shape = 's32[2]{0}', space=sflag, size = 0x8, scoped, tag = 'scoped memory for tpu_custom_call.1']
    #allocation7 [shape = 'u8[24576]{0}', space=vmem, size = 0x6000, scoped, tag = 'output window, operand 0']
    %15 = vsyncpa [#allocation5], 0
    %s16 = scalar_lea.sflag [#allocation5], 1
    %17 = vsyncpa %s16, 0
    %18 = vsyncpa [#allocation6], 0
    %s19 = scalar_lea.sflag [#allocation6], 1
    %20 = vsyncpa %s19, 0
    loop: start=0, step=1, limit=4
    $region2: #{tpu_custom_call.1} parent=1 // loop_pre_header
      _
    $region3: #{tpu_custom_call.1} parent=1 // loop_header
      %s22 = sphi 0, %s26
      %p23 = scmp.ge.s32.totalorder %s22, 4
      %s29 = sphi 0, %s41
      %s30 = sphi 0, %s37
      %s31 = sphi 0, %s29
      %s32 = sphi 0, %s30
      %s33 = sphi 0, %s31
      %s34 = sphi 0, %s32
      %s44 = sphi 0, %s46
      %s47 = sphi 0, %s44
      %s48 = sphi 0, %s47
      %s64 = sphi 0, %s48
      %s72 = sphi 0, %s74
      %s75 = sphi 0, %s72
      %s76 = sphi 0, %s75
      %s92 = sphi 0, %s76
      %s100 = sphi 0, %s102
      %s103 = sphi 0, %s100
      %s104 = sphi 0, %s103
      %s120 = sphi 0, %s104
      %s128 = sphi 0, %s130
      %s131 = sphi 0, %s128
      %s132 = sphi 0, %s131
      %s148 = sphi 0, %s132
    $region4: #{tpu_custom_call.1} parent=1 // loop_header_branch
      %25 = sbr.rel (%p23) target = $region8
    $region5: #{tpu_custom_call.1} parent=1 // loop_body
      %s27 = ssub.s32 %s22, 1
      %s28 = ssub.s32 %s22, 2
      %s35 = sadd.s32 1, %s30
      %p36 = scmp.ge.s32.totalorder %s35, 1
      %s37 = scalar_select %p36, 0, %s35
      %s38 = sadd.s32 1, %s29
      %s39 = scalar_select %p36, %s38, %s29
      %p40 = scmp.ge.s32.totalorder %s39, 2
      %s41 = scalar_select %p40, 0, %s39
      %s42 = ssub.s32 %s29, %s41
      %p43 = scmp.eq.s32.totalorder %s42, 0
      %s45 = sadd.s32 %s44, 1
      %s46 = scalar_select %p43, %s44, %s45
      %p49 = pneg %p43
      %p50 = scmp.eq.s32.totalorder %s22, 1
      %p51 = por %p49, %p50
      %p52 = scmp.ne.s32.totalorder %s44, %s47
      %p53 = scmp.eq.s32.totalorder %s22, 0
      %p54 = por %p52, %p53
      %p55 = scmp.ne.s32.totalorder %s44, %s47
      %p56 = scmp.eq.s32.totalorder %s27, 1
      %p57 = por %p55, %p56
      %p58 = scmp.ne.s32.totalorder %s47, %s48
      %p59 = scmp.eq.s32.totalorder %s27, 0
      %p60 = por %p58, %p59
      %p61 = scmp.ne.s32.totalorder %s47, %s48
      %p62 = scmp.eq.s32.totalorder %s28, 1
      %p63 = por %p61, %p62
      %p65 = scmp.ne.s32.totalorder %s48, %s64
      %p66 = scmp.eq.s32.totalorder %s28, 0
      %p67 = por %p65, %p66
      %s68 = ssub.s32 %s29, %s41
      %s69 = ssub.s32 %s30, %s37
      %s70 = sor.u32 %s68, %s69
      %p71 = scmp.eq.s32.totalorder %s70, 0
      %s73 = sadd.s32 %s72, 1
      %s74 = scalar_select %p71, %s72, %s73
      %p77 = pneg %p71
      %p78 = scmp.eq.s32.totalorder %s22, 1
      %p79 = por %p77, %p78
      %p80 = scmp.ne.s32.totalorder %s72, %s75
      %p81 = scmp.eq.s32.totalorder %s22, 0
      %p82 = por %p80, %p81
      %p83 = scmp.ne.s32.totalorder %s72, %s75
      %p84 = scmp.eq.s32.totalorder %s27, 1
      %p85 = por %p83, %p84
      %p86 = scmp.ne.s32.totalorder %s75, %s76
      %p87 = scmp.eq.s32.totalorder %s27, 0
      %p88 = por %p86, %p87
      %p89 = scmp.ne.s32.totalorder %s75, %s76
      %p90 = scmp.eq.s32.totalorder %s28, 1
      %p91 = por %p89, %p90
      %p93 = scmp.ne.s32.totalorder %s76, %s92
      %p94 = scmp.eq.s32.totalorder %s28, 0
      %p95 = por %p93, %p94
      %s96 = ssub.s32 %s29, %s41
      %s97 = ssub.s32 %s30, %s37
      %s98 = sor.u32 %s96, %s97
      %p99 = scmp.eq.s32.totalorder %s98, 0
      %s101 = sadd.s32 %s100, 1
      %s102 = scalar_select %p99, %s100, %s101
      %p105 = pneg %p99
      %p106 = scmp.eq.s32.totalorder %s22, 1
      %p107 = por %p105, %p106
      %p108 = scmp.ne.s32.totalorder %s100, %s103
      %p109 = scmp.eq.s32.totalorder %s22, 0
      %p110 = por %p108, %p109
      %p111 = scmp.ne.s32.totalorder %s100, %s103
      %p112 = scmp.eq.s32.totalorder %s27, 1
      %p113 = por %p111, %p112
      %p114 = scmp.ne.s32.totalorder %s103, %s104
      %p115 = scmp.eq.s32.totalorder %s27, 0
      %p116 = por %p114, %p115
      %p117 = scmp.ne.s32.totalorder %s103, %s104
      %p118 = scmp.eq.s32.totalorder %s28, 1
      %p119 = por %p117, %p118
      %p121 = scmp.ne.s32.totalorder %s104, %s120
      %p122 = scmp.eq.s32.totalorder %s28, 0
      %p123 = por %p121, %p122
      %s124 = ssub.s32 %s29, %s41
      %s125 = ssub.s32 %s30, %s37
      %s126 = sor.u32 %s124, %s125
      %p127 = scmp.eq.s32.totalorder %s126, 0
      %s129 = sadd.s32 %s128, 1
      %s130 = scalar_select %p127, %s128, %s129
      %p133 = pneg %p127
      %p134 = scmp.eq.s32.totalorder %s22, 1
      %p135 = por %p133, %p134
      %p136 = scmp.ne.s32.totalorder %s128, %s131
      %p137 = scmp.eq.s32.totalorder %s22, 0
      %p138 = por %p136, %p137
      %p139 = scmp.ne.s32.totalorder %s128, %s131
      %p140 = scmp.eq.s32.totalorder %s27, 1
      %p141 = por %p139, %p140
      %p142 = scmp.ne.s32.totalorder %s131, %s132
      %p143 = scmp.eq.s32.totalorder %s27, 0
      %p144 = por %p142, %p143
      %p145 = scmp.ne.s32.totalorder %s131, %s132
      %p146 = scmp.eq.s32.totalorder %s28, 1
      %p147 = por %p145, %p146
      %p149 = scmp.ne.s32.totalorder %s132, %s148
      %p150 = scmp.eq.s32.totalorder %s28, 0
      %p151 = por %p149, %p150
      %p152 = scmp.le.s32.totalorder 1, %s22
      %p153 = scmp.lt.s32.totalorder %s22, 3
      %p154 = pnand %p152, %p153
      %p155 = pneg %p154
      // Predicated region
      $region9: #{tpu_custom_call.1} parent=5 // pred_check
        _
      $region10: #{tpu_custom_call.1} parent=5 // pred_check_branch
        %157 = sbr.rel (%p154) target = $region12
      $region11: #{tpu_custom_call.1} parent=5 // pred_region
        %s158 = ssub.s32 %s22, 1
      $region12: #{tpu_custom_call.1} parent=5 // pred_fallthru
        _
      %p159 = scmp.lt.s32.totalorder %s22, 2
      // Predicated region
      $region13: #{tpu_custom_call.1} parent=5 // pred_check
        %p160 = pneg %p159
      $region14: #{tpu_custom_call.1} parent=5 // pred_check_branch
        %162 = sbr.rel (%p160) target = $region16
      $region15: #{tpu_custom_call.1} parent=5 // pred_region
        // Predicated region
        $region17: #{tpu_custom_call.1} parent=15 // pred_check
          %p163 = pneg %p54
        $region18: #{tpu_custom_call.1} parent=15 // pred_check_branch
          %165 = sbr.rel (%p163) target = $region20
        $region19: #{tpu_custom_call.1} parent=15 // pred_region
          %s166 = sand.u32 %s44, 1
          %s167 = scalar_lea.sflag [#allocation5], %s166
          %s168 = sand.u32 %s44, 1
          %s169 = smul.addr %s168, 8
          %s170 = scalar_lea.vmem [#allocation4], %s169
          %s172 = ssub.s32 128, 128
          %173 = vsyncadd %s167, %s172
          %s174 = smul.addr %s29, 128
          %s175 = scalar_lea.hbm %s1, %s174
          %s177 = sshll.u32 %s170, 4
          %s178 = int_to_ptr.vmem [resolvable:$true] %s177
          %180 = dma.hbm_to_vmem [thread:$0]  %s175, 128, %s178, %s167
        $region20: #{tpu_custom_call.1} parent=15 // pred_fallthru
          _
        // Predicated region
        $region21: #{tpu_custom_call.1} parent=15 // pred_check
          %p181 = pneg %p82
        $region22: #{tpu_custom_call.1} parent=15 // pred_check_branch
          %183 = sbr.rel (%p181) target = $region24
        $region23: #{tpu_custom_call.1} parent=15 // pred_region
          %p184 = scmp.lt.s32.totalorder %s29, 1
          %s185 = scalar_select %p184, %s29, 1
          %p186 = scmp.lt.s32.totalorder %s30, 0
          %s187 = scalar_select %p186, %s30, 0
          %s188 = sadd.s32 %s187, %s185
          %s189 = scalar_lea.vmem %s2, %s188
        $region24: #{tpu_custom_call.1} parent=15 // pred_fallthru
          _
        // Predicated region
        $region25: #{tpu_custom_call.1} parent=15 // pred_check
          %p190 = pneg %p110
        $region26: #{tpu_custom_call.1} parent=15 // pred_check_branch
          %192 = sbr.rel (%p190) target = $region28
        $region27: #{tpu_custom_call.1} parent=15 // pred_region
          %p193 = scmp.lt.s32.totalorder %s29, 1
          %s194 = scalar_select %p193, %s29, 1
          %p195 = scmp.lt.s32.totalorder %s30, 0
          %s196 = scalar_select %p195, %s30, 0
          %s197 = sadd.s32 %s196, %s194
          %s198 = scalar_lea.vmem %s3, %s197
        $region28: #{tpu_custom_call.1} parent=15 // pred_fallthru
          _
      $region16: #{tpu_custom_call.1} parent=5 // pred_fallthru
        _
      %p199 = scmp.le.s32.totalorder 1, %s22
      %p200 = scmp.lt.s32.totalorder %s22, 3
      %p201 = pnand %p199, %p200
      %p202 = pneg %p201
      // Predicated region
      $region29: #{tpu_custom_call.1} parent=5 // pred_check
        _
      $region30: #{tpu_custom_call.1} parent=5 // pred_check_branch
        %204 = sbr.rel (%p201) target = $region32
      $region31: #{tpu_custom_call.1} parent=5 // pred_region
        %s205 = ssub.s32 %s22, 1
        %s206 = sand.u32 %s47, 1
        %s207 = scalar_lea.sflag [#allocation5], %s206
        %s208 = sand.u32 %s47, 1
        %s209 = smul.addr %s208, 8
        %s210 = scalar_lea.vmem [#allocation4], %s209
        // Predicated region
        $region33: #{tpu_custom_call.1} parent=31 // pred_check
          %p211 = pneg %p60
        $region34: #{tpu_custom_call.1} parent=31 // pred_check_branch
          %213 = sbr.rel (%p211) target = $region36
        $region35: #{tpu_custom_call.1} parent=31 // pred_region
          %214 = dma.done %s207, 128
        $region36: #{tpu_custom_call.1} parent=31 // pred_fallthru
          _
        %s215 = sand.u32 %s47, 1
        %s216 = scalar_lea.sflag [#allocation5], %s215
        %s217 = sand.u32 %s47, 1
        %s218 = smul.addr %s217, 8
        %s219 = scalar_lea.vmem [#allocation4], %s218
        %p220 = pneg %p60
        %p221 = pneg %p57
        %p222 = scmp.lt.s32.totalorder %s31, 1
        %s223 = scalar_select %p222, %s31, 1
        %p224 = scmp.lt.s32.totalorder %s32, 0
        %s225 = scalar_select %p224, %s32, 0
        %s226 = sadd.s32 %s225, %s223
        %s227 = scalar_lea.vmem %s2, %s226
        %p228 = pneg %p88
        %p229 = pneg %p85
        %p230 = scmp.lt.s32.totalorder %s31, 1
        %s231 = scalar_select %p230, %s31, 1
        %p232 = scmp.lt.s32.totalorder %s32, 0
        %s233 = scalar_select %p232, %s32, 0
        %s234 = sadd.s32 %s233, %s231
        %s235 = scalar_lea.vmem %s3, %s234
        %p236 = pneg %p116
        %p237 = pneg %p113
        %p238 = pneg %p144
        %p239 = pneg %p141
        %s240 = sand.u32 %s131, 1
        %s241 = scalar_lea.sflag [#allocation6], %s240
        %s242 = sand.u32 %s131, 1
        %s243 = smul.addr %s242, 24
        %s244 = scalar_lea.vmem [#allocation7], %s243
        %p245 = scmp.lt.s32.totalorder %s31, 1
        %s246 = scalar_select %p245, %s31, 1
        %p247 = scmp.lt.s32.totalorder %s32, 0
        %s248 = scalar_select %p247, %s32, 0
        %s249 = sadd.s32 %s248, %s246
        %s250 = scalar_lea.vmem %s2, %s249
        %p251 = scmp.lt.s32.totalorder %s31, 1
        %s252 = scalar_select %p251, %s31, 1
        %p253 = scmp.lt.s32.totalorder %s32, 0
        %s254 = scalar_select %p253, %s32, 0
        %s255 = sadd.s32 %s254, %s252
        %s256 = scalar_lea.vmem %s3, %s255
        %s257 = smul.u32 3, %s32
        %s258 = sshra.s32 %s32, 7
        %s259 = sand.u32 %s32, 127
        %s260 = sadd.s32 %s258, %s31
        %s261 = smul.u32 %s260, 128
        %s262 = sshra.s32 %s32, 7
        %s263 = sand.u32 %s32, 127
        %s264 = sadd.s32 %s261, %s263
        %s265 = sld [smem:[#allocation3 + %s264]]
        %s266 = scalar_lea.vmem %s210, %s265 [#allocation4]
        %v267 = vld [vmem:[%s266] sm:$0xff]
        %v268 = vld [vmem:[%s250] sm:$0x1]
        %v269 = vld [vmem:[%s256] sm:$0x1]
        %v270 = vlaneseq
        %v271 = vshrl.u32 %v270, 7
        %v272 = vadd.s32 %v271, 8
        %v273 = vadd.s32 %v271, 16
        %v274 = vlaneseq
        %v275 = vshrl.u32 %v274, 7
        %v276 = vsub.s32 0, %v275
        %v277 = vrot.slane %v268, %v276
        %v278 = vsub.s32 %v271, %v277
        %v279 = vsub.s32 %v272, %v277
        %v280 = vsub.s32 %v273, %v277
        %v281 = vlaneseq
        %v282 = vshrl.u32 %v281, 7
        %v283 = vsub.s32 0, %v282
        %v284 = vrot.slane %v269, %v283
        %vm285 = vcmp.lt.u32.totalorder %v278, %v284
        %vm286 = vcmp.lt.u32.totalorder %v279, %v284
        %vm287 = vcmp.lt.u32.totalorder %v280, %v284
        %v288 = vsel %vm285, 1, 0
        %v289 = vsel %vm286, 1, 0
        %v290 = vsel %vm287, 1, 0
        %v291 = vcvt.s32.f32 %v288
        %v292 = vcvt.s32.f32 %v289
        %v293 = vcvt.s32.f32 %v290
        %vm294 = vcmask 64512
        %v296 = vsel %vm294, %v291, 0
        %v299 = vsel %vm294, %v292, 0
        %v302 = vsel %vm294, %v293, 0
        %304 = vmatprep.subr.mxu0 0.0
        %305 = vmatpush1.msra.mxu0 0.0
        %306 = vmatprep.subr.mxu0 0.0
        %307 = vmatpush1.msra.mxu0 0.0
        %308 = vmatprep.subr.mxu0 0.0
        %309 = vmatpush1.msra.mxu0 0.0
        %310 = vmatprep.subr.mxu0 0.0
        %311 = vmatpush1.msra.mxu0 0.0
        %312 = vmatprep.subr.mxu0 0.0
        %313 = vmatpush1.msra.mxu0 0.0
        %314 = vmatprep.subr.mxu0 0.0
        %315 = vmatpush1.msra.mxu0 0.0
        %316 = vmatprep.subr.mxu0 0.0
        %317 = vmatpush1.msra.mxu0 0.0
        %318 = vmatprep.subr.mxu0 0.0
        %319 = vmatpush1.msra.mxu0 0.0
        %320 = vmatprep.subr.mxu0 0.0
        %321 = vmatpush1.msra.mxu0 0.0
        %322 = vmatprep.subr.mxu0 0.0
        %323 = vmatpush1.msra.mxu0 0.0
        %324 = vmatprep.subr.mxu0 0.0
        %325 = vmatpush1.msra.mxu0 0.0
        %326 = vmatprep.subr.mxu0 0.0
        %327 = vmatpush1.msra.mxu0 0.0
        %328 = vmatprep.subr.mxu0 0.0
        %329 = vmatpush1.msra.mxu0 0.0
        %330 = vmatprep.subr.mxu0 0.0
        %331 = vmatpush1.msra.mxu0 0.0
        %332 = vmatprep.subr.mxu0 0.0
        %333 = vmatpush1.msra.mxu0 0.0
        %334 = vmatprep.subr.mxu0 0.0
        %335 = vmatpush1.msra.mxu0 %v267
        %336 = vmatprep.subr.mxu0 0.0
        %337 = vmatpush2.msra.mxu0 0.0
        %338 = vmatprep.subr.mxu0 0.0
        %339 = vmatpush2.msra.mxu0 0.0
        %340 = vmatprep.subr.mxu0 0.0
        %341 = vmatpush2.msra.mxu0 0.0
        %342 = vmatprep.subr.mxu0 0.0
        %343 = vmatpush2.msra.mxu0 0.0
        %344 = vmatprep.subr.mxu0 0.0
        %345 = vmatpush2.msra.mxu0 0.0
        %346 = vmatprep.subr.mxu0 0.0
        %347 = vmatpush2.msra.mxu0 0.0
        %348 = vmatprep.subr.mxu0 0.0
        %349 = vmatpush2.msra.mxu0 0.0
        %350 = vmatprep.subr.mxu0 0.0
        %351 = vmatpush2.msra.mxu0 0.0
        %352 = vmatprep.subr.mxu0 0.0
        %353 = vmatpush2.msra.mxu0 0.0
        %354 = vmatprep.subr.mxu0 0.0
        %355 = vmatpush2.msra.mxu0 0.0
        %356 = vmatprep.subr.mxu0 0.0
        %357 = vmatpush2.msra.mxu0 0.0
        %358 = vmatprep.subr.mxu0 0.0
        %359 = vmatpush2.msra.mxu0 0.0
        %360 = vmatprep.subr.mxu0 0.0
        %361 = vmatpush2.msra.mxu0 0.0
        %362 = vmatprep.subr.mxu0 0.0
        %363 = vmatpush2.msra.mxu0 0.0
        %364 = vmatprep.subr.mxu0 0.0
        %365 = vmatpush2.msra.mxu0 0.0
        %366 = vmatprep.subr.mxu0 0.0
        %367 = vmatpush2.msra.mxu0 0.0
        %368 = vmatprep.mubr.f32.mxu0 0.0
        %369 = vmatmul.mubr.f32.gmra.mxu0 %v296
        %v370 = vpop.f32.mrf.mxu0
        %v371 = vadd.f32 0.0, %v370
        %v372 = vpop.f32.mrf.mxu0
        %373 = vmatprep.mubr.f32.mxu0 0.0
        %374 = vmatmul.mubr.f32.gmra.mxu0 %v299
        %v375 = vpop.f32.mrf.mxu0
        %v376 = vadd.f32 0.0, %v375
        %v377 = vpop.f32.mrf.mxu0
        %378 = vmatprep.mubr.f32.mxu0 0.0
        %379 = vmatmul.mubr.f32.gmra.mxu0 %v302
        %v380 = vpop.f32.mrf.mxu0
        %v381 = vadd.f32 0.0, %v380
        %v382 = vpop.f32.mrf.mxu0
        %383 = vdwg.mxu0
        %vm384 = vcmask 261120
        %385 = vst.msk [vmem:[%s244] sm:$0xff] %vm384, %v371
        %386 = vst.msk [vmem:[%s244 + $0x8] sm:$0xff] %vm384, %v376
        %387 = vst.msk [vmem:[%s244 + $0x10] sm:$0xff] %vm384, %v381
        %s388 = sand.u32 %s131, 1
        %s389 = scalar_lea.sflag [#allocation6], %s388
        %s390 = sand.u32 %s131, 1
        %s391 = smul.addr %s390, 24
        %s392 = scalar_lea.vmem [#allocation7], %s391
        // Predicated region
        $region37: #{tpu_custom_call.1} parent=31 // pred_check
          %p393 = pneg %p141
        $region38: #{tpu_custom_call.1} parent=31 // pred_check_branch
          %395 = sbr.rel (%p393) target = $region40
        $region39: #{tpu_custom_call.1} parent=31 // pred_region
          %s396 = smul.u32 3, %s32
          %s398 = ssub.s32 384, 384
          %399 = vsyncadd %s389, %s398
          %s400 = smul.addr %s31, 3
          %s401 = sadd.s32 %s396, %s400
          %s402 = smul.addr %s401, 128
          %s403 = scalar_lea.hbm %s4, %s402
          %s404 = sshll.u32 %s392, 4
          %s405 = int_to_ptr.vmem [resolvable:$true] %s404
          %410 = dma.vmem_to_hbm [thread:$0]  %s405, 384, %s403, %s389, 128, 128, 8
        $region40: #{tpu_custom_call.1} parent=31 // pred_fallthru
          _
      $region32: #{tpu_custom_call.1} parent=5 // pred_fallthru
        _
      %p411 = scmp.le.s32.totalorder 2, %s22
      // Predicated region
      $region41: #{tpu_custom_call.1} parent=5 // pred_check
        %p412 = pneg %p411
      $region42: #{tpu_custom_call.1} parent=5 // pred_check_branch
        %414 = sbr.rel (%p412) target = $region44
      $region43: #{tpu_custom_call.1} parent=5 // pred_region
        %s415 = ssub.s32 %s22, 2
        // Predicated region
        $region45: #{tpu_custom_call.1} parent=43 // pred_check
          %p416 = pneg %p147
        $region46: #{tpu_custom_call.1} parent=43 // pred_check_branch
          %418 = sbr.rel (%p416) target = $region48
        $region47: #{tpu_custom_call.1} parent=43 // pred_region
          %s419 = sand.u32 %s132, 1
          %s420 = scalar_lea.sflag [#allocation6], %s419
          %s421 = sand.u32 %s132, 1
          %s422 = smul.addr %s421, 24
          %s423 = scalar_lea.vmem [#allocation7], %s422
          %424 = dma.done %s420, 384
        $region48: #{tpu_custom_call.1} parent=43 // pred_fallthru
          _
      $region44: #{tpu_custom_call.1} parent=5 // pred_fallthru
        _
    $region6: #{tpu_custom_call.1} parent=1 // loop_footer
      %s26 = sadd.s32 1, %s22
    $region7: #{tpu_custom_call.1} parent=1 // loop_footer_branch
      %21 = sbr.rel target = $region3
    $region8: #{tpu_custom_call.1} parent=1 // loop_exit
      _
    %425 = vsyncpa [#allocation5], 1
    %s426 = scalar_lea.sflag [#allocation5], 1
    %427 = vsyncpa %s426, 1
    %428 = vsyncpa [#allocation6], 1
    %s429 = scalar_lea.sflag [#allocation6], 1
    %430 = vsyncpa %s429, 1

</llo_original>
